<compile_context>
chip_gen: v6e
topology: v6e:2x2x1
jax: 0.10.0
libtpu: 0.0.40
codegen_flags: <defaults>
</compile_context>

<pallas_src>
import jax
import jax.numpy as jnp
import numpy as np
from jax.experimental import pallas as pl
from jax.experimental.pallas import tpu as pltpu


def _round_up(n, m):
    return ((n + m - 1) // m) * m


def inception_top_kernel(x_ref, wt_ref, b_ref, o_ref):
    # In-kernel bf16 cast of the activation tile (cheap VPU work hidden under the
    # DMA/MXU); the activation tensor therefore crosses HBM exactly once.
    x = x_ref[...].astype(jnp.bfloat16)
    # Linear: logits = x @ W^T + b   (bf16 operands, f32 accumulation on the MXU)
    logits = jnp.dot(x, wt_ref[...], preferred_element_type=jnp.float32)
    logits = logits + b_ref[...]            # bias row (1, O_pad); padded cols are -inf
    # Numerically-stable softmax over the class (lane) dimension, all in f32.
    m = jnp.max(logits, axis=-1, keepdims=True)
    e = jnp.exp(logits - m)                 # padded cols: exp(-inf) = 0 -> prob exactly 0
    denom = jnp.sum(e, axis=-1, keepdims=True)
    # EUP reciprocal (separate bundle slot); store in the (bf16) output dtype.
    o_ref[...] = (e * pl.reciprocal(denom, approx=True)).astype(o_ref.dtype)


def prepare_inception_top_params(w, b, param_dtype=jnp.bfloat16):
    """One-time parameter prep (do this at load time, not per call):
    transpose Linear weight (O, C) -> (C, O), pad O up to a multiple of 128,
    cast the weight to bf16, and pad the *f32* bias columns with -inf so the
    padded logits vanish under softmax (padded weight columns are exactly 0)."""
    O, C = w.shape
    O_pad = _round_up(O, 128)
    wt = jnp.zeros((C, O_pad), param_dtype)
    wt = wt.at[:, :O].set(jnp.asarray(w).astype(param_dtype).T)
    b_pad = jnp.full((1, O_pad), -jnp.inf, dtype=jnp.float32)   # keep f32: -inf trick
    b_pad = b_pad.at[0, :O].set(jnp.asarray(b, jnp.float32))
    return wt, b_pad, O


def inception_top(x_nchw, wt_pad, b_pad, num_classes, *, block_b=None,
                  out_dtype=jnp.bfloat16):
    """x_nchw: (B, C, 1, 1) in its native dtype; wt_pad: (C, O_pad) bf16;
    b_pad: (1, O_pad) f32 (-inf padded).
    Returns PADDED softmax probabilities (B, O_pad) in `out_dtype`; columns
    [num_classes:] are exactly zero, so consumers may use the padded array
    directly or slice lazily (no forced post-call copy here)."""
    del num_classes  # padded columns are exactly zero; caller slices lazily if needed
    B = x_nchw.shape[0]
    x2d = x_nchw.reshape(B, -1)             # nn.Flatten(1): (B, C, 1, 1) -> (B, C); no cast
    C, O_pad = wt_pad.shape
    assert x2d.shape[1] == C, f"channel mismatch: {x2d.shape[1]} vs {C}"

    if block_b is None:
        if B <= 16:
            block_b = _round_up(B, 8)
        else:
            # >=2 grid steps so v7x megacore can shard the batch over both TCs;
            # up to 512-row tiles to stay near the HBM roofline on v6e.
            block_b = min(_round_up(pl.cdiv(B, 2), 8), 512)
    grid = (pl.cdiv(B, block_b),)

    # Explicit scoped-VMEM budget: 2x double-buffered activation tile (native dtype),
    # resident weight + bias, 2x output tile, plus f32 logits/exp temporaries.
    # (v5e's default scoped limit is only 16 MiB; v7x physical is 64 MiB.)
    out_dtype = np.dtype(out_dtype)
    vmem_bytes = (2 * block_b * C * x2d.dtype.itemsize
                  + C * O_pad * wt_pad.dtype.itemsize
                  + O_pad * b_pad.dtype.itemsize
                  + 2 * block_b * O_pad * out_dtype.itemsize
                  + 3 * block_b * O_pad * 4)
    vmem_bytes = min(max(int(vmem_bytes * 1.25) + (2 << 20), 32 << 20), 64 << 20)

    probs_pad = pl.pallas_call(
        inception_top_kernel,
        out_shape=jax.ShapeDtypeStruct((B, O_pad), out_dtype),
        grid_spec=pl.GridSpec(
            grid=grid,
            in_specs=[
                # batch tile of activations, native dtype (double-buffered by default;
                # bump to pipeline_mode=pl.Buffered(3) if the x DMA shows exposed stall)
                pl.BlockSpec((block_b, C), lambda i: (i, 0)),
                # full weight, resident across the whole grid: constant index_map,
                # single-buffered to save VMEM (one DMA total)
                pl.BlockSpec((C, O_pad), lambda i: (0, 0),
                             pipeline_mode=pl.Buffered(1)),
                # bias row, also resident / single-buffered
                pl.BlockSpec((1, O_pad), lambda i: (0, 0),
                             pipeline_mode=pl.Buffered(1)),
            ],
            # lane-dense output tile (O_pad multiple of 128 -> unmasked stores)
            out_specs=pl.BlockSpec((block_b, O_pad), lambda i: (i, 0)),
        ),
        compiler_params=pltpu.CompilerParams(
            dimension_semantics=("parallel",),
            vmem_limit_bytes=vmem_bytes),
    )(x2d, wt_pad, b_pad)

    return probs_pad


if __name__ == "__main__":
    # Small synthetic head: (B, C, 1, 1) -> Flatten -> Linear(C, O) -> Softmax.
    # O = 100 deliberately exercises the pad-to-128 + -inf-mask path.
    B, C, O = 8, 256, 100
    key = jax.random.PRNGKey(0)
    kx, kw, kb = jax.random.split(key, 3)

    x = jax.random.normal(kx, (B, C, 1, 1), dtype=jnp.float32)
    w = jax.random.normal(kw, (O, C), dtype=jnp.float32) * 0.02   # Linear.weight (O, C)
    b = jax.random.normal(kb, (O,), dtype=jnp.float32) * 0.01     # Linear.bias  (O,)

    # One-time parameter prep (transpose + pad + bf16 cast), then the kernel call.
    wt_pad, b_pad, num_classes = prepare_inception_top_params(w, b)
    probs_pad = inception_top(x, wt_pad, b_pad, num_classes)
    probs_pad = jax.block_until_ready(probs_pad)

    # Test-only slice back to the real class count (padded columns are exactly 0;
    # production consumers can keep the padded array and avoid this copy).
    out = jnp.asarray(probs_pad[:, :num_classes], jnp.float32)

    # Reference in plain JAX (f32): flatten -> linear -> softmax.
    ref = jax.nn.softmax(x.reshape(B, -1) @ w.T + b, axis=-1)
    assert probs_pad.shape[0] == B and probs_pad.shape[1] % 128 == 0
    assert out.shape == (B, O)
    # Padded class columns must be exactly zero (the -inf bias trick).
    assert float(jnp.max(jnp.abs(jnp.asarray(probs_pad[:, num_classes:], jnp.float32)))) == 0.0
    # bf16 matmul + bf16 output probs + approx reciprocal => loose tolerances.
    assert jnp.allclose(jnp.sum(out, axis=-1), 1.0, atol=2e-2)
    assert float(jnp.max(jnp.abs(out - ref))) < 2e-2
    # Argmax check tolerant to near-ties under bf16 quantization: the class the
    # kernel picks must be (nearly) the reference max-probability class.
    rows = jnp.arange(B)
    picked = jnp.argmax(out, axis=-1)
    assert float(jnp.max(ref.max(axis=-1) - ref[rows, picked])) < 1e-3

    print("KERNEL_OK")
</pallas_src>

<mosaic_0001>
module attributes {stable_mosaic.version = 11 : i64} {
  func.func @inception_top_kernel(%arg0: i32, %arg1: memref<8x256xf32, #tpu.memory_space<vmem>>, %arg2: memref<256x128xbf16, #tpu.memory_space<vmem>>, %arg3: memref<1x128xf32, #tpu.memory_space<vmem>>, %arg4: memref<8x128xbf16, #tpu.memory_space<vmem>>) attributes {dimension_semantics = [#tpu.dimension_semantics<parallel>], iteration_bounds = array<i64: 1>, scalar_prefetch = 0 : i64, scratch_operands = 0 : i64, tpu.core_type = #tpu.core_type<tc>, window_params = [{transform_indices = @transform_0, window_bounds = array<i64: 8, 256>}, {pipeline_mode = #tpu.pipeline_mode<synchronous>, transform_indices = @transform_1, window_bounds = array<i64: 256, 128>}, {pipeline_mode = #tpu.pipeline_mode<synchronous>, transform_indices = @transform_2, window_bounds = array<i64: 1, 128>}, {transform_indices = @transform_3, window_bounds = array<i64: 8, 128>}]} {
    %c0 = arith.constant 0 : index
    %c0_0 = arith.constant 0 : index
    %0 = vector.load %arg1[%c0, %c0_0] : memref<8x256xf32, #tpu.memory_space<vmem>>, vector<8x256xf32>
    %1 = arith.truncf %0 : vector<8x256xf32> to vector<8x256xbf16>
    %c0_1 = arith.constant 0 : index
    %c0_2 = arith.constant 0 : index
    %2 = vector.load %arg2[%c0_1, %c0_2] : memref<256x128xbf16, #tpu.memory_space<vmem>>, vector<256x128xbf16>
    %cst = arith.constant dense<0.000000e+00> : vector<8x128xf32>
    %3 = tpu.matmul %1, %2, %cst {dimension_numbers = #tpu.dot_dimension_numbers<[1], [0], [0], [1], [0, 0, 1, 1], [], []>} : vector<8x256xbf16>, vector<256x128xbf16>, vector<8x128xf32> -> vector<8x128xf32>
    %c0_3 = arith.constant 0 : index
    %c0_4 = arith.constant 0 : index
    %4 = vector.load %arg3[%c0_3, %c0_4] : memref<1x128xf32, #tpu.memory_space<vmem>>, vector<1x128xf32>
    %5 = vector.broadcast %4 : vector<1x128xf32> to vector<8x128xf32>
    %6 = arith.addf %3, %5 : vector<8x128xf32>
    %cst_5 = arith.constant dense<0xFF800000> : vector<8xf32>
    %7 = vector.multi_reduction <maximumf>, %6, %cst_5 [1] : vector<8x128xf32> to vector<8xf32>
    %8 = vector.shape_cast %7 : vector<8xf32> to vector<8x1xf32>
    %9 = vector.broadcast %8 : vector<8x1xf32> to vector<8x128xf32>
    %10 = arith.subf %6, %9 : vector<8x128xf32>
    %11 = math.exp %10 : vector<8x128xf32>
    %cst_6 = arith.constant dense<0.000000e+00> : vector<8xf32>
    %12 = vector.multi_reduction <add>, %11, %cst_6 [1] : vector<8x128xf32> to vector<8xf32>
    %13 = vector.shape_cast %12 : vector<8xf32> to vector<8x1xf32>
    %14 = tpu.reciprocal %13 {approx = true} : vector<8x1xf32> -> vector<8x1xf32>
    %15 = vector.broadcast %14 : vector<8x1xf32> to vector<8x128xf32>
    %16 = arith.mulf %11, %15 : vector<8x128xf32>
    %17 = arith.truncf %16 : vector<8x128xf32> to vector<8x128xbf16>
    %c0_7 = arith.constant 0 : index
    %c0_8 = arith.constant 0 : index
    %18 = vector.load %arg4[%c0_7, %c0_8] : memref<8x128xbf16, #tpu.memory_space<vmem>>, vector<8x128xbf16>
    tpu.vector_store %arg4[%c0_7, %c0_8], %17 {strides = array<i32>} : memref<8x128xbf16, #tpu.memory_space<vmem>>, vector<8x128xbf16>,
    return
  }
  func.func @transform_0(%arg0: i32) -> (i32, i32) {
    %c0_i32 = arith.constant 0 : i32
    %c0_i32_0 = arith.constant 0 : i32
    return %arg0, %c0_i32 : i32, i32
  }
  func.func @transform_1(%arg0: i32) -> (i32, i32) {
    %c0_i32 = arith.constant 0 : i32
    %c0_i32_0 = arith.constant 0 : i32
    %c0_i32_1 = arith.constant 0 : i32
    return %c0_i32, %c0_i32_0 : i32, i32
  }
  func.func @transform_2(%arg0: i32) -> (i32, i32) {
    %c0_i32 = arith.constant 0 : i32
    %c0_i32_0 = arith.constant 0 : i32
    %c0_i32_1 = arith.constant 0 : i32
    return %c0_i32, %c0_i32_0 : i32, i32
  }
  func.func @transform_3(%arg0: i32) -> (i32, i32) {
    %c0_i32 = arith.constant 0 : i32
    %c0_i32_0 = arith.constant 0 : i32
    return %arg0, %c0_i32 : i32, i32
  }
}

</mosaic_0001>

<llo_original>
// kernel: tpu_custom_call.1
$region0: #{tpu_custom_call.1}
  #allocation0 [shape = 'u32[]', space=smem, size = 0x4, offset = 0x4, fixed_abs, tag = 'smem constant byte address 0x4 - core index']
  #allocation1 [shape = 'u32[144,128]{1,0:T(1,128)}', space=vmem, size = 0x12000, scoped, tag = 'internal scratch']
  %s0 = inlined_call_operand.hbm [shape: f32[8,256], index: 0, kind: input, shape index: {}]
  %s1 = inlined_call_operand.hbm [shape: bf16[256,128], index: 1, kind: input, shape index: {}]
  %s2 = inlined_call_operand.vmem [shape: f32[1,128], index: 2, kind: input, shape index: {}]
  %s3 = inlined_call_operand.hbm [shape: bf16[8,128], index: 3, kind: output, shape index: {}]
  %s4 = sld [smem:[#allocation0]]
  $region30: #{tpu_custom_call.1} parent=0
    _
  %s6 = ssub.s32 1, %s4
  %s7 = scalar_select 0, %s6, %s4
  $region1: #{tpu_custom_call.1} parent=0
    #allocation2 [shape = 'u8[8192]{0}', space=vmem, size = 0x2000, scoped, tag = 'input window, operand 0, single buffered']
    #allocation3 [shape = 's32[1]{0}', space=sflag, size = 0x4, scoped, tag = 'scoped memory for tpu_custom_call.1']
    #allocation4 [shape = 's32[1]{0}', space=sflag, size = 0x4, scoped, tag = 'scoped memory for tpu_custom_call.1']
    #allocation5 [shape = 'u8[65536]{0}', space=vmem, size = 0x10000, scoped, tag = 'input window, operand 1, single buffered']
    #allocation6 [shape = 's32[1]{0}', space=sflag, size = 0x4, scoped, tag = 'scoped memory for tpu_custom_call.1']
    #allocation7 [shape = 'u8[2048]{0}', space=vmem, size = 0x800, scoped, tag = 'output window, operand 0, single buffered']
    %8 = vsyncpa [#allocation3], 0
    %9 = vsyncpa [#allocation6], 0
    %10 = vsyncpa [#allocation4], 0
    // Predicated region
    $region2: #{tpu_custom_call.1} parent=1 // pred_check
      _
    $region3: #{tpu_custom_call.1} parent=1 // pred_check_branch
      %12 = sbr.rel (0) target = $region5
    $region4: #{tpu_custom_call.1} parent=1 // pred_region
      %s14 = ssub.s32 256, 256
      %15 = vsyncadd [#allocation3], %s14
      %s17 = sshll.u32 [#allocation2], 4
      %s18 = int_to_ptr.vmem [resolvable:$true] %s17
      %20 = dma.hbm_to_vmem [thread:$0]  %s0, 256, %s18, [#allocation3]
    $region5: #{tpu_custom_call.1} parent=1 // pred_fallthru
      _
    // Predicated region
    $region6: #{tpu_custom_call.1} parent=1 // pred_check
      _
    $region7: #{tpu_custom_call.1} parent=1 // pred_check_branch
      %22 = sbr.rel (0) target = $region9
    $region8: #{tpu_custom_call.1} parent=1 // pred_region
      %s24 = ssub.s32 2048, 2048
      %25 = vsyncadd [#allocation6], %s24
      %s26 = sshll.u32 [#allocation5], 4
      %s27 = int_to_ptr.vmem [resolvable:$true] %s26
      %32 = dma.hbm_to_vmem [thread:$0]  %s1, 2048, %s27, [#allocation6], 64, 64, 4
    $region9: #{tpu_custom_call.1} parent=1 // pred_fallthru
      _
    // Predicated region
    $region10: #{tpu_custom_call.1} parent=1 // pred_check
      _
    $region11: #{tpu_custom_call.1} parent=1 // pred_check_branch
      %34 = sbr.rel (0) target = $region13
    $region12: #{tpu_custom_call.1} parent=1 // pred_region
      _
    $region13: #{tpu_custom_call.1} parent=1 // pred_fallthru
      _
    // Predicated region
    $region14: #{tpu_custom_call.1} parent=1 // pred_check
      _
    $region15: #{tpu_custom_call.1} parent=1 // pred_check_branch
      %36 = sbr.rel (0) target = $region17
    $region16: #{tpu_custom_call.1} parent=1 // pred_region
      %37 = dma.done [#allocation3], 256
    $region17: #{tpu_custom_call.1} parent=1 // pred_fallthru
      _
    // Predicated region
    $region18: #{tpu_custom_call.1} parent=1 // pred_check
      _
    $region19: #{tpu_custom_call.1} parent=1 // pred_check_branch
      %39 = sbr.rel (0) target = $region21
    $region20: #{tpu_custom_call.1} parent=1 // pred_region
      %40 = dma.done [#allocation6], 2048
    $region21: #{tpu_custom_call.1} parent=1 // pred_fallthru
      _
    %v42 = vld [vmem:[#allocation2] sm:$0xff]
    %v43 = vld [vmem:[#allocation2 + $0x8] sm:$0xff]
    %v44 = vpack.c.bf16 %v42, %v42
    %v45 = vpack.c.bf16 %v43, %v43
    %v46 = vld [vmem:[#allocation5] sm:$0xf]
    %v47 = vld [vmem:[#allocation5 + $0x4] sm:$0xf]
    %v48 = vld [vmem:[#allocation5 + $0x8] sm:$0xf]
    %v49 = vld [vmem:[#allocation5 + $0xc] sm:$0xf]
    %v50 = vld [vmem:[#allocation5 + $0x10] sm:$0xf]
    %v51 = vld [vmem:[#allocation5 + $0x14] sm:$0xf]
    %v52 = vld [vmem:[#allocation5 + $0x18] sm:$0xf]
    %v53 = vld [vmem:[#allocation5 + $0x1c] sm:$0xf]
    %v54 = vld [vmem:[#allocation5 + $0x20] sm:$0xf]
    %v55 = vld [vmem:[#allocation5 + $0x24] sm:$0xf]
    %v56 = vld [vmem:[#allocation5 + $0x28] sm:$0xf]
    %v57 = vld [vmem:[#allocation5 + $0x2c] sm:$0xf]
    %v58 = vld [vmem:[#allocation5 + $0x30] sm:$0xf]
    %v59 = vld [vmem:[#allocation5 + $0x34] sm:$0xf]
    %v60 = vld [vmem:[#allocation5 + $0x38] sm:$0xf]
    %v61 = vld [vmem:[#allocation5 + $0x3c] sm:$0xf]
    %v62 = vld [vmem:[#allocation5 + $0x40] sm:$0xf]
    %v63 = vld [vmem:[#allocation5 + $0x44] sm:$0xf]
    %v64 = vld [vmem:[#allocation5 + $0x48] sm:$0xf]
    %v65 = vld [vmem:[#allocation5 + $0x4c] sm:$0xf]
    %v66 = vld [vmem:[#allocation5 + $0x50] sm:$0xf]
    %v67 = vld [vmem:[#allocation5 + $0x54] sm:$0xf]
    %v68 = vld [vmem:[#allocation5 + $0x58] sm:$0xf]
    %v69 = vld [vmem:[#allocation5 + $0x5c] sm:$0xf]
    %v70 = vld [vmem:[#allocation5 + $0x60] sm:$0xf]
    %v71 = vld [vmem:[#allocation5 + $0x64] sm:$0xf]
    %v72 = vld [vmem:[#allocation5 + $0x68] sm:$0xf]
    %v73 = vld [vmem:[#allocation5 + $0x6c] sm:$0xf]
    %v74 = vld [vmem:[#allocation5 + $0x70] sm:$0xf]
    %v75 = vld [vmem:[#allocation5 + $0x74] sm:$0xf]
    %v76 = vld [vmem:[#allocation5 + $0x78] sm:$0xf]
    %v77 = vld [vmem:[#allocation5 + $0x7c] sm:$0xf]
    %v78 = vld [vmem:[%s2] sm:$0x1]
    %v80 = vlaneseq
    %v81 = vshrl.u32 %v80, 7
    %v82 = vsub.s32 0, %v81
    %v83 = vrot.slane %v78, %v82
    %v117 = vunpack.c.l.b16 %v46
    %v118 = vunpack.c.l.b16 %v47
    %v119 = vunpack.c.l.b16 %v48
    %v120 = vunpack.c.l.b16 %v49
    %v121 = vunpack.c.l.b16 %v50
    %v122 = vunpack.c.l.b16 %v51
    %v123 = vunpack.c.l.b16 %v52
    %v124 = vunpack.c.l.b16 %v53
    %v125 = vunpack.c.l.b16 %v54
    %v126 = vunpack.c.l.b16 %v55
    %v127 = vunpack.c.l.b16 %v56
    %v128 = vunpack.c.l.b16 %v57
    %v129 = vunpack.c.l.b16 %v58
    %v130 = vunpack.c.l.b16 %v59
    %v131 = vunpack.c.l.b16 %v60
    %v132 = vunpack.c.l.b16 %v61
    %v133 = vunpack.c.l.b16 %v62
    %v134 = vunpack.c.l.b16 %v63
    %v135 = vunpack.c.l.b16 %v64
    %v136 = vunpack.c.l.b16 %v65
    %v137 = vunpack.c.l.b16 %v66
    %v138 = vunpack.c.l.b16 %v67
    %v139 = vunpack.c.l.b16 %v68
    %v140 = vunpack.c.l.b16 %v69
    %v141 = vunpack.c.l.b16 %v70
    %v142 = vunpack.c.l.b16 %v71
    %v143 = vunpack.c.l.b16 %v72
    %v144 = vunpack.c.l.b16 %v73
    %v145 = vunpack.c.l.b16 %v74
    %v146 = vunpack.c.l.b16 %v75
    %v147 = vunpack.c.l.b16 %v76
    %v148 = vunpack.c.l.b16 %v77
    %v149 = vpack.c.b16 %v118, %v117
    %v150 = vpack.c.b16 %v120, %v119
    %v151 = vpack.c.b16 %v122, %v121
    %v152 = vpack.c.b16 %v124, %v123
    %v153 = vpack.c.b16 %v126, %v125
    %v154 = vpack.c.b16 %v128, %v127
    %v155 = vpack.c.b16 %v130, %v129
    %v156 = vpack.c.b16 %v132, %v131
    %v157 = vpack.c.b16 %v134, %v133
    %v158 = vpack.c.b16 %v136, %v135
    %v159 = vpack.c.b16 %v138, %v137
    %v160 = vpack.c.b16 %v140, %v139
    %v161 = vpack.c.b16 %v142, %v141
    %v162 = vpack.c.b16 %v144, %v143
    %v163 = vpack.c.b16 %v146, %v145
    %v164 = vpack.c.b16 %v148, %v147
    %181 = vmatprep.subr.bf16.mxu0 0
    %182 = vmatpush1.bf16.msra.mxu0 %v156
    %183 = vmatprep.subr.bf16.mxu0 0
    %184 = vmatpush1.bf16.msra.mxu0 %v155
    %185 = vmatprep.subr.bf16.mxu0 0
    %186 = vmatpush1.bf16.msra.mxu0 %v154
    %187 = vmatprep.subr.bf16.mxu0 0
    %188 = vmatpush1.bf16.msra.mxu0 %v153
    %189 = vmatprep.subr.bf16.mxu0 0
    %190 = vmatpush1.bf16.msra.mxu0 %v152
    %191 = vmatprep.subr.bf16.mxu0 0
    %192 = vmatpush1.bf16.msra.mxu0 %v151
    %193 = vmatprep.subr.bf16.mxu0 0
    %194 = vmatpush1.bf16.msra.mxu0 %v150
    %195 = vmatprep.subr.bf16.mxu0 0
    %196 = vmatpush1.bf16.msra.mxu0 %v149
    %197 = vmatprep.subr.bf16.mxu0 0
    %198 = vmatpush2.bf16.msra.mxu0 %v164
    %199 = vmatprep.subr.bf16.mxu0 0
    %200 = vmatpush2.bf16.msra.mxu0 %v163
    %201 = vmatprep.subr.bf16.mxu0 0
    %202 = vmatpush2.bf16.msra.mxu0 %v162
    %203 = vmatprep.subr.bf16.mxu0 0
    %204 = vmatpush2.bf16.msra.mxu0 %v161
    %205 = vmatprep.subr.bf16.mxu0 0
    %206 = vmatpush2.bf16.msra.mxu0 %v160
    %207 = vmatprep.subr.bf16.mxu0 0
    %208 = vmatpush2.bf16.msra.mxu0 %v159
    %209 = vmatprep.subr.bf16.mxu0 0
    %210 = vmatpush2.bf16.msra.mxu0 %v158
    %211 = vmatprep.subr.bf16.mxu0 0
    %212 = vmatpush2.bf16.msra.mxu0 %v157
    %213 = vmatprep.mubr.bf16.mxu0 %v45
    %214 = vmatmul.mubr.bf16.gmra.mxu0 %v44
    %v215 = vpop.f32.mrf.mxu0
    %v216 = vadd.f32 %v83, %v215
    %v217 = vpop.f32.mrf.mxu0
    %v218 = vpop.f32.mrf.mxu0
    %v219 = vpop.f32.mrf.mxu0
    %220 = vdwg.mxu0
    %221 = vmax.xlane.f32.xlu0 %v216
    %v222 = vpop.xlane.xlu0 %221
    %v223 = vsub.f32 %v216, %v222
    %v224 = vmul.f32 %v223, 1.442695
    %v225 = vpow.pop %v224
    %226 = vadd.xlane.f32.xlu0 %v225
    %v227 = vpop.xlane.xlu0 %226
    %v228 = vrcp.pop %v227
    %v229 = vmul.f32 %v225, %v228
    %v230 = vpack.c.bf16 %v229, %v229
    %231 = vst [vmem:[#allocation7] sm:$0xf] %v230
    // Predicated region
    $region22: #{tpu_custom_call.1} parent=1 // pred_check
      _
    $region23: #{tpu_custom_call.1} parent=1 // pred_check_branch
      %233 = sbr.rel (0) target = $region25
    $region24: #{tpu_custom_call.1} parent=1 // pred_region
      %s235 = ssub.s32 64, 64
      %236 = vsyncadd [#allocation4], %s235
      %s238 = sshll.u32 [#allocation7], 4
      %s239 = int_to_ptr.vmem [resolvable:$true] %s238
      %241 = dma.vmem_to_hbm [thread:$0]  %s239, 64, %s3, [#allocation4]
    $region25: #{tpu_custom_call.1} parent=1 // pred_fallthru
      _
    // Predicated region
    $region26: #{tpu_custom_call.1} parent=1 // pred_check
      _
    $region27: #{tpu_custom_call.1} parent=1 // pred_check_branch
      %243 = sbr.rel (0) target = $region29
    $region28: #{tpu_custom_call.1} parent=1 // pred_region
      %244 = dma.done [#allocation4], 64
    $region29: #{tpu_custom_call.1} parent=1 // pred_fallthru
      _
    %245 = vsyncpa [#allocation3], 1
    %246 = vsyncpa [#allocation6], 1
    %247 = vsyncpa [#allocation4], 1

</llo_original>
